<compile_context>
chip_gen: v5e
topology: v5e:2x2
jax: 0.10.0
libtpu: 0.0.40
codegen_flags: <defaults>
</compile_context>

<pallas_src>
import functools

import jax
import jax.numpy as jnp
from jax.experimental import pallas as pl
from jax.experimental.pallas import tpu as pltpu

HIDDEN = 64  # per-stream hidden width (PyTorch module uses 64)


def dueling_q_kernel(x_ref, w1_ref, w2_ref, w3_ref, b_ref, out_ref, sum_ref,
                     *, action_size, tile_b, batch_real):
    i = pl.program_id(0)

    @pl.when(i == 0)
    def _():
        sum_ref[...] = jnp.zeros_like(sum_ref)

    x = x_ref[...]                               # (TB, S) bf16
    b = b_ref[...]                               # (3, 128) f32
    b1 = b[0:1, :]                               # (1, 128)
    b2 = b[1:2, :]                               # (1, 128)
    b3 = b[2:3, :action_size + 1]                # (1, A+1)

    # Layer 1: both streams in one lane-dense bf16 matmul, f32 accumulation.
    h = jnp.dot(x, w1_ref[...], preferred_element_type=jnp.float32) + b1
    h = jnp.maximum(h, 0.0)                      # (TB, 128) f32

    # Layer 2: block-diagonal fused matmul.
    h = jnp.dot(h.astype(jnp.bfloat16), w2_ref[...],
                preferred_element_type=jnp.float32) + b2
    h = jnp.maximum(h, 0.0)                      # (TB, 128) f32

    # Layer 3: fused heads. Lanes 0..A-1 = advantage (aligned with out_ref),
    # lane A = state value.
    va = jnp.dot(h.astype(jnp.bfloat16), w3_ref[...],
                 preferred_element_type=jnp.float32) + b3      # (TB, A+1)

    advantage = va[:, :action_size]                            # (TB, A)
    state_value = va[:, action_size:action_size + 1]           # (TB, 1)

    # Mask batch-padding rows out of the global mean.
    row = i * tile_b + jax.lax.broadcasted_iota(jnp.int32, (tile_b, 1), 0)
    valid = (row < batch_real).astype(jnp.float32)             # (TB, 1)
    sum_ref[...] += jnp.sum(advantage * valid, keepdims=True)  # (1, 1)

    # Write uncorrected Q = V + A into the VMEM-resident output slab.
    row_start = pl.multiple_of(i * tile_b, tile_b)
    out_ref[pl.ds(row_start, tile_b), :] = state_value + advantage

    # Last step: subtract the global advantage mean from the whole slab.
    @pl.when(i == pl.num_programs(0) - 1)
    def _():
        mean11 = sum_ref[...] * (1.0 / float(batch_real * action_size))
        out_ref[...] = out_ref[...] - mean11


def pack_params(p, action_size, hidden=HIDDEN):
    """Fuse the two streams into 3 packed bf16 weights + one f32 bias slab.

    W1 = [vw1 | aw1]                       (S, 128)        lane-dense
    W2 = blockdiag(vw2, aw2)               (128, 128)
    W3 = [[0, vw3], [aw3, 0]]              (128, A+1)      adv in lanes 0..A-1,
                                                            V in lane A
    B  = rows: layer-1 bias, layer-2 bias, [ab3 | vb3]     (3, 128)
    """
    h2 = 2 * hidden

    w1 = jnp.concatenate([p["vw1"], p["aw1"]], axis=1)                 # (S, 128)

    w2 = jnp.zeros((h2, h2), jnp.float32)
    w2 = w2.at[:hidden, :hidden].set(p["vw2"])
    w2 = w2.at[hidden:, hidden:].set(p["aw2"])                         # (128, 128)

    w3 = jnp.zeros((h2, action_size + 1), jnp.float32)
    w3 = w3.at[hidden:, :action_size].set(p["aw3"])                    # advantage
    w3 = w3.at[:hidden, action_size:action_size + 1].set(p["vw3"])     # value

    b = jnp.zeros((3, h2), jnp.float32)
    b = b.at[0, :].set(jnp.concatenate([p["vb1"], p["ab1"]], axis=1)[0])
    b = b.at[1, :].set(jnp.concatenate([p["vb2"], p["ab2"]], axis=1)[0])
    b = b.at[2, :action_size].set(p["ab3"][0])
    b = b.at[2, action_size].set(p["vb3"][0, 0])

    return (w1.astype(jnp.bfloat16), w2.astype(jnp.bfloat16),
            w3.astype(jnp.bfloat16), b)


def dueling_q_forward(state, packed, action_size, *, tile_b=128):
    """state: (B, state_size) f32. packed: (W1, W2, W3, B_bias) from pack_params.

    tile_b: batch rows per grid step; 128 fills a v5e MXU pass, use 256 on
    v6e/v7x.  Tiny batches are clamped so they are not over-padded.
    """
    w1, w2, w3, b = packed
    batch, state_size = state.shape

    tile_b = max(8, min(tile_b, pl.cdiv(batch, 8) * 8))   # multiple of 8
    n_tiles = pl.cdiv(batch, tile_b)
    b_pad = n_tiles * tile_b

    x = state.astype(jnp.bfloat16)
    if b_pad != batch:
        x = jnp.pad(x, ((0, b_pad - batch), (0, 0)))

    kernel = functools.partial(dueling_q_kernel, action_size=action_size,
                               tile_b=tile_b, batch_real=batch)

    out = pl.pallas_call(
        kernel,
        out_shape=jax.ShapeDtypeStruct((b_pad, action_size), jnp.float32),
        grid_spec=pltpu.PrefetchScalarGridSpec(
            num_scalar_prefetch=0,
            grid=(n_tiles,),
            in_specs=[
                pl.BlockSpec((tile_b, state_size), lambda i: (i, 0)),  # x tile
                pl.BlockSpec(w1.shape, lambda i: (0, 0)),              # pinned
                pl.BlockSpec(w2.shape, lambda i: (0, 0)),              # pinned
                pl.BlockSpec(w3.shape, lambda i: (0, 0)),              # pinned
                pl.BlockSpec(b.shape, lambda i: (0, 0)),               # pinned
            ],
            # Output stays VMEM-resident across the grid (constant index_map)
            # so the last step can apply the global-mean correction, then one
            # writeback.
            out_specs=pl.BlockSpec((b_pad, action_size), lambda i: (0, 0)),
            scratch_shapes=[pltpu.VMEM((1, 1), jnp.float32)],
        ),
        compiler_params=pltpu.CompilerParams(
            dimension_semantics=("arbitrary",),
        ),
    )(x, w1, w2, w3, b)
    return out[:batch]


def init_params(key, state_size, action_size, hidden=HIDDEN):
    """PyTorch-Linear-style init (uniform +/- 1/sqrt(fan_in)), stored (in, out)."""
    def linear(k, fan_in, fan_out):
        kw, kb = jax.random.split(k)
        bound = 1.0 / (fan_in ** 0.5)
        w = jax.random.uniform(kw, (fan_in, fan_out), jnp.float32, -bound, bound)
        bb = jax.random.uniform(kb, (1, fan_out), jnp.float32, -bound, bound)
        return w, bb

    keys = jax.random.split(key, 6)
    p = {}
    p["vw1"], p["vb1"] = linear(keys[0], state_size, hidden)
    p["vw2"], p["vb2"] = linear(keys[1], hidden, hidden)
    p["vw3"], p["vb3"] = linear(keys[2], hidden, 1)
    p["aw1"], p["ab1"] = linear(keys[3], state_size, hidden)
    p["aw2"], p["ab2"] = linear(keys[4], hidden, hidden)
    p["aw3"], p["ab3"] = linear(keys[5], hidden, action_size)
    return p


def reference_forward(state, p):
    """Pure-JAX f32 reference matching the PyTorch module exactly."""
    def relu(v):
        return jnp.maximum(v, 0.0)
    h = relu(state @ p["vw1"] + p["vb1"])
    h = relu(h @ p["vw2"] + p["vb2"])
    v = h @ p["vw3"] + p["vb3"]
    g = relu(state @ p["aw1"] + p["ab1"])
    g = relu(g @ p["aw2"] + p["ab2"])
    a = g @ p["aw3"] + p["ab3"]
    return v + (a - jnp.mean(a))


def reference_packed(state, packed, action_size):
    """Pure-JAX reference using the SAME bf16 packed operands as the kernel."""
    w1, w2, w3, b = packed
    x = state.astype(jnp.bfloat16)
    h = jnp.maximum(jnp.dot(x, w1, preferred_element_type=jnp.float32)
                    + b[0:1, :], 0.0)
    h = jnp.maximum(jnp.dot(h.astype(jnp.bfloat16), w2,
                            preferred_element_type=jnp.float32) + b[1:2, :], 0.0)
    va = (jnp.dot(h.astype(jnp.bfloat16), w3,
                  preferred_element_type=jnp.float32)
          + b[2:3, :action_size + 1])
    a = va[:, :action_size]
    v = va[:, action_size:action_size + 1]
    return v + (a - jnp.mean(a))


if __name__ == "__main__":
    key = jax.random.PRNGKey(0)
    k_params, k_state = jax.random.split(key)

    batch = 40          # small; not a multiple of the tile -> exercises masking
    state_size = 37     # Banana-env observation size from the original project
    action_size = 4
    tile_b = 16         # small demo tile (3 grid steps); 128/256 in production

    params = init_params(k_params, state_size, action_size)
    packed = pack_params(params, action_size)
    state = jax.random.normal(k_state, (batch, state_size), jnp.float32)

    out = dueling_q_forward(state, packed, action_size, tile_b=tile_b)
    out = jax.block_until_ready(out)
    assert out.shape == (batch, action_size)

    # Bit-matched reference (same bf16 matmul operands, f32 accumulation).
    ref_bf16 = reference_packed(state, packed, action_size)
    assert jnp.allclose(out, ref_bf16, atol=1e-4, rtol=1e-4), \
        "mismatch vs packed bf16 reference"

    # Full-precision reference matching the PyTorch module (loose tolerance
    # covers the intentional bf16 cast of the matmul operands).
    ref_f32 = reference_forward(state, params)
    assert jnp.allclose(out, ref_f32, atol=1e-1, rtol=1e-1), \
        "mismatch vs f32 reference"

    print("KERNEL_OK")
</pallas_src>

<mosaic_0001>
module attributes {stable_mosaic.version = 11 : i64} {
  func.func @dueling_q_kernel(%arg0: i32, %arg1: memref<16x37xbf16, #tpu.memory_space<vmem>>, %arg2: memref<37x128xbf16, #tpu.memory_space<vmem>>, %arg3: memref<128x128xbf16, #tpu.memory_space<vmem>>, %arg4: memref<128x5xbf16, #tpu.memory_space<vmem>>, %arg5: memref<3x128xf32, #tpu.memory_space<vmem>>, %arg6: memref<48x4xf32, #tpu.memory_space<vmem>>, %arg7: memref<1x1xf32, #tpu.memory_space<vmem>>) attributes {dimension_semantics = [#tpu.dimension_semantics<arbitrary>], iteration_bounds = array<i64: 3>, scalar_prefetch = 0 : i64, scratch_operands = 1 : i64, tpu.core_type = #tpu.core_type<tc>, window_params = [{transform_indices = @transform_0, window_bounds = array<i64: 16, 37>}, {pipeline_mode = #tpu.pipeline_mode<synchronous>, transform_indices = @transform_1, window_bounds = array<i64: 37, 128>}, {pipeline_mode = #tpu.pipeline_mode<synchronous>, transform_indices = @transform_2, window_bounds = array<i64: 128, 128>}, {pipeline_mode = #tpu.pipeline_mode<synchronous>, transform_indices = @transform_3, window_bounds = array<i64: 128, 5>}, {pipeline_mode = #tpu.pipeline_mode<synchronous>, transform_indices = @transform_4, window_bounds = array<i64: 3, 128>}, {pipeline_mode = #tpu.pipeline_mode<synchronous>, transform_indices = @transform_5, window_bounds = array<i64: 48, 4>}]} {
    %c0_i32 = arith.constant 0 : i32
    %0 = arith.cmpi eq, %arg0, %c0_i32 : i32
    %1 = arith.extui %0 : i1 to i32
    %c0_i32_0 = arith.constant 0 : i32
    %2 = arith.cmpi ne, %1, %c0_i32_0 : i32
    scf.if %2 {
      %cst_22 = arith.constant 0.000000e+00 : f32
      %55 = vector.broadcast %cst_22 : f32 to vector<1x1xf32>
      %c0_23 = arith.constant 0 : index
      %c0_24 = arith.constant 0 : index
      %56 = vector.load %arg7[%c0_23, %c0_24] : memref<1x1xf32, #tpu.memory_space<vmem>>, vector<1x1xf32>
      tpu.vector_store %arg7[%c0_23, %c0_24], %55 {strides = array<i32>} : memref<1x1xf32, #tpu.memory_space<vmem>>, vector<1x1xf32>,
    } else {
    }
    %c0 = arith.constant 0 : index
    %c0_1 = arith.constant 0 : index
    %3 = vector.load %arg1[%c0, %c0_1] : memref<16x37xbf16, #tpu.memory_space<vmem>>, vector<16x37xbf16>
    %c0_2 = arith.constant 0 : index
    %c0_3 = arith.constant 0 : index
    %4 = vector.load %arg5[%c0_2, %c0_3] : memref<3x128xf32, #tpu.memory_space<vmem>>, vector<3x128xf32>
    %5 = vector.extract_strided_slice %4 {offsets = [0, 0], sizes = [1, 128], strides = [1, 1]} : vector<3x128xf32> to vector<1x128xf32>
    %6 = vector.extract_strided_slice %4 {offsets = [1, 0], sizes = [1, 128], strides = [1, 1]} : vector<3x128xf32> to vector<1x128xf32>
    %7 = vector.extract_strided_slice %4 {offsets = [2, 0], sizes = [1, 5], strides = [1, 1]} : vector<3x128xf32> to vector<1x5xf32>
    %c0_4 = arith.constant 0 : index
    %c0_5 = arith.constant 0 : index
    %8 = vector.load %arg2[%c0_4, %c0_5] : memref<37x128xbf16, #tpu.memory_space<vmem>>, vector<37x128xbf16>
    %cst = arith.constant dense<0.000000e+00> : vector<16x128xf32>
    %9 = tpu.matmul %3, %8, %cst {dimension_numbers = #tpu.dot_dimension_numbers<[1], [0], [0], [1], [0, 0, 1, 1], [], []>} : vector<16x37xbf16>, vector<37x128xbf16>, vector<16x128xf32> -> vector<16x128xf32>
    %10 = vector.broadcast %5 : vector<1x128xf32> to vector<16x128xf32>
    %11 = arith.addf %9, %10 : vector<16x128xf32>
    %cst_6 = arith.constant 0.000000e+00 : f32
    %12 = vector.broadcast %cst_6 : f32 to vector<16x128xf32>
    %13 = arith.maximumf %11, %12 : vector<16x128xf32>
    %14 = arith.truncf %13 : vector<16x128xf32> to vector<16x128xbf16>
    %c0_7 = arith.constant 0 : index
    %c0_8 = arith.constant 0 : index
    %15 = vector.load %arg3[%c0_7, %c0_8] : memref<128x128xbf16, #tpu.memory_space<vmem>>, vector<128x128xbf16>
    %cst_9 = arith.constant dense<0.000000e+00> : vector<16x128xf32>
    %16 = tpu.matmul %14, %15, %cst_9 {dimension_numbers = #tpu.dot_dimension_numbers<[1], [0], [0], [1], [0, 0, 1, 1], [], []>} : vector<16x128xbf16>, vector<128x128xbf16>, vector<16x128xf32> -> vector<16x128xf32>
    %17 = vector.broadcast %6 : vector<1x128xf32> to vector<16x128xf32>
    %18 = arith.addf %16, %17 : vector<16x128xf32>
    %cst_10 = arith.constant 0.000000e+00 : f32
    %19 = vector.broadcast %cst_10 : f32 to vector<16x128xf32>
    %20 = arith.maximumf %18, %19 : vector<16x128xf32>
    %21 = arith.truncf %20 : vector<16x128xf32> to vector<16x128xbf16>
    %c0_11 = arith.constant 0 : index
    %c0_12 = arith.constant 0 : index
    %22 = vector.load %arg4[%c0_11, %c0_12] : memref<128x5xbf16, #tpu.memory_space<vmem>>, vector<128x5xbf16>
    %cst_13 = arith.constant dense<0.000000e+00> : vector<16x5xf32>
    %23 = tpu.matmul %21, %22, %cst_13 {dimension_numbers = #tpu.dot_dimension_numbers<[1], [0], [0], [1], [0, 0, 1, 1], [], []>} : vector<16x128xbf16>, vector<128x5xbf16>, vector<16x5xf32> -> vector<16x5xf32>
    %24 = vector.broadcast %7 : vector<1x5xf32> to vector<16x5xf32>
    %25 = arith.addf %23, %24 : vector<16x5xf32>
    %26 = vector.extract_strided_slice %25 {offsets = [0, 0], sizes = [16, 4], strides = [1, 1]} : vector<16x5xf32> to vector<16x4xf32>
    %27 = vector.extract_strided_slice %25 {offsets = [0, 4], sizes = [16, 1], strides = [1, 1]} : vector<16x5xf32> to vector<16x1xf32>
    %c16_i32 = arith.constant 16 : i32
    %28 = arith.muli %arg0, %c16_i32 : i32
    %29 = tpu.iota {dimensions = array<i32: 0>} : vector<16x1xi32>
    %30 = vector.broadcast %28 : i32 to vector<16x1xi32>
    %31 = arith.addi %30, %29 : vector<16x1xi32>
    %c40_i32 = arith.constant 40 : i32
    %32 = vector.broadcast %c40_i32 : i32 to vector<16x1xi32>
    %33 = arith.cmpi slt, %31, %32 : vector<16x1xi32>
    %34 = arith.extui %33 : vector<16x1xi1> to vector<16x1xi32>
    %35 = arith.sitofp %34 : vector<16x1xi32> to vector<16x1xf32>
    %c0_14 = arith.constant 0 : index
    %c0_15 = arith.constant 0 : index
    %36 = vector.load %arg7[%c0_14, %c0_15] : memref<1x1xf32, #tpu.memory_space<vmem>>, vector<1x1xf32>
    %37 = vector.broadcast %35 : vector<16x1xf32> to vector<16x4xf32>
    %38 = arith.mulf %26, %37 : vector<16x4xf32>
    %39 = vector.shape_cast %38 : vector<16x4xf32> to vector<1x16x4xf32>
    %cst_16 = arith.constant dense<0.000000e+00> : vector<1xf32>
    %40 = vector.multi_reduction <add>, %39, %cst_16 [1, 2] : vector<1x16x4xf32> to vector<1xf32>
    %41 = vector.shape_cast %40 : vector<1xf32> to vector<1x1x1xf32>
    %42 = vector.extract %41[0, 0, 0] : f32 from vector<1x1x1xf32>
    %43 = vector.broadcast %42 : f32 to vector<1x1xf32>
    %44 = arith.addf %36, %43 : vector<1x1xf32>
    %c0_17 = arith.constant 0 : index
    %c0_18 = arith.constant 0 : index
    %45 = vector.load %arg7[%c0_17, %c0_18] : memref<1x1xf32, #tpu.memory_space<vmem>>, vector<1x1xf32>
    tpu.vector_store %arg7[%c0_17, %c0_18], %44 {strides = array<i32>} : memref<1x1xf32, #tpu.memory_space<vmem>>, vector<1x1xf32>,
    %c16_i32_19 = arith.constant 16 : i32
    %46 = arith.muli %arg0, %c16_i32_19 : i32
    %47 = tpu.assume_multiple %46, 16 : i32
    %48 = vector.broadcast %27 : vector<16x1xf32> to vector<16x4xf32>
    %49 = arith.addf %48, %26 : vector<16x4xf32>
    %50 = arith.index_cast %47 : i32 to index
    %c0_20 = arith.constant 0 : index
    %51 = vector.load %arg6[%50, %c0_20] : memref<48x4xf32, #tpu.memory_space<vmem>>, vector<16x4xf32>
    tpu.vector_store %arg6[%50, %c0_20], %49 {strides = array<i32>} : memref<48x4xf32, #tpu.memory_space<vmem>>, vector<16x4xf32>,
    %c2_i32 = arith.constant 2 : i32
    %52 = arith.cmpi eq, %arg0, %c2_i32 : i32
    %53 = arith.extui %52 : i1 to i32
    %c0_i32_21 = arith.constant 0 : i32
    %54 = arith.cmpi ne, %53, %c0_i32_21 : i32
    scf.if %54 {
      %c0_22 = arith.constant 0 : index
      %c0_23 = arith.constant 0 : index
      %55 = vector.load %arg7[%c0_22, %c0_23] : memref<1x1xf32, #tpu.memory_space<vmem>>, vector<1x1xf32>
      %cst_24 = arith.constant 6.250000e-03 : f32
      %56 = vector.broadcast %cst_24 : f32 to vector<1x1xf32>
      %57 = arith.mulf %55, %56 : vector<1x1xf32>
      %c0_25 = arith.constant 0 : index
      %c0_26 = arith.constant 0 : index
      %58 = vector.load %arg6[%c0_25, %c0_26] : memref<48x4xf32, #tpu.memory_space<vmem>>, vector<48x4xf32>
      %59 = vector.broadcast %57 : vector<1x1xf32> to vector<48x4xf32>
      %60 = arith.subf %58, %59 : vector<48x4xf32>
      %c0_27 = arith.constant 0 : index
      %c0_28 = arith.constant 0 : index
      %61 = vector.load %arg6[%c0_27, %c0_28] : memref<48x4xf32, #tpu.memory_space<vmem>>, vector<48x4xf32>
      tpu.vector_store %arg6[%c0_27, %c0_28], %60 {strides = array<i32>} : memref<48x4xf32, #tpu.memory_space<vmem>>, vector<48x4xf32>,
    } else {
    }
    return
  }
  func.func @transform_0(%arg0: i32) -> (i32, i32) {
    %c0_i32 = arith.constant 0 : i32
    %c0_i32_0 = arith.constant 0 : i32
    return %arg0, %c0_i32 : i32, i32
  }
  func.func @transform_1(%arg0: i32) -> (i32, i32) {
    %c0_i32 = arith.constant 0 : i32
    %c0_i32_0 = arith.constant 0 : i32
    %c0_i32_1 = arith.constant 0 : i32
    return %c0_i32, %c0_i32_0 : i32, i32
  }
  func.func @transform_2(%arg0: i32) -> (i32, i32) {
    %c0_i32 = arith.constant 0 : i32
    %c0_i32_0 = arith.constant 0 : i32
    %c0_i32_1 = arith.constant 0 : i32
    return %c0_i32, %c0_i32_0 : i32, i32
  }
  func.func @transform_3(%arg0: i32) -> (i32, i32) {
    %c0_i32 = arith.constant 0 : i32
    %c0_i32_0 = arith.constant 0 : i32
    %c0_i32_1 = arith.constant 0 : i32
    return %c0_i32, %c0_i32_0 : i32, i32
  }
  func.func @transform_4(%arg0: i32) -> (i32, i32) {
    %c0_i32 = arith.constant 0 : i32
    %c0_i32_0 = arith.constant 0 : i32
    %c0_i32_1 = arith.constant 0 : i32
    return %c0_i32, %c0_i32_0 : i32, i32
  }
  func.func @transform_5(%arg0: i32) -> (i32, i32) {
    %c0_i32 = arith.constant 0 : i32
    %c0_i32_0 = arith.constant 0 : i32
    %c0_i32_1 = arith.constant 0 : i32
    return %c0_i32, %c0_i32_0 : i32, i32
  }
}

</mosaic_0001>

<llo_original>
// kernel: tpu_custom_call.1
$region0: #{tpu_custom_call.1}
  #allocation0 [shape = 'u32[]', space=smem, size = 0x4, offset = 0x4, fixed_abs, tag = 'smem constant byte address 0x4 - core index']
  #allocation1 [shape = 'u32[72,128]{1,0:T(1,128)}', space=vmem, size = 0x9000, scoped, tag = 'internal scratch']
  #allocation2 [shape = 'f32[1,1]{1,0:T(1,128)}', space=vmem, size = 0x200, scoped, tag = 'scratch operand']
  %s0 = inlined_call_operand.vmem [shape: bf16[48,37], index: 0, kind: input, shape index: {}]
  %s1 = inlined_call_operand.vmem [shape: bf16[37,128], index: 1, kind: input, shape index: {}]
  %s2 = inlined_call_operand.vmem [shape: bf16[128,128], index: 2, kind: input, shape index: {}]
  %s3 = inlined_call_operand.vmem [shape: bf16[128,5], index: 3, kind: input, shape index: {}]
  %s4 = inlined_call_operand.vmem [shape: f32[3,128], index: 4, kind: input, shape index: {}]
  %s5 = inlined_call_operand.vmem [shape: f32[48,4], index: 5, kind: output, shape index: {}]
  %s6 = sld [smem:[#allocation0]]
  $region61: #{tpu_custom_call.1} parent=0
    _
  %s8 = ssub.s32 1, %s6
  %s9 = scalar_select 0, %s8, %s6
  loop: start=0, step=1, limit=5
  $region2: #{tpu_custom_call.1} parent=0 // loop_pre_header
    _
  $region3: #{tpu_custom_call.1} parent=0 // loop_header
    %s11 = sphi 0, %s15
    %p12 = scmp.ge.s32.totalorder %s11, 5
    %s21 = sphi 0, %s23
    %s24 = sphi 0, %s21
    %s25 = sphi 0, %s24
    %s41 = sphi 0, %s25
    %s45 = sphi 0, %s45
    %s47 = sphi 0, %s45
    %s48 = sphi 0, %s47
    %s62 = sphi 0, %s48
    %s66 = sphi 0, %s66
    %s68 = sphi 0, %s66
    %s69 = sphi 0, %s68
    %s83 = sphi 0, %s69
    %s87 = sphi 0, %s87
    %s89 = sphi 0, %s87
    %s90 = sphi 0, %s89
    %s104 = sphi 0, %s90
    %s108 = sphi 0, %s108
    %s110 = sphi 0, %s108
    %s111 = sphi 0, %s110
    %s125 = sphi 0, %s111
    %s129 = sphi 0, %s129
    %s131 = sphi 0, %s129
    %s132 = sphi 0, %s131
    %s146 = sphi 0, %s132
  $region4: #{tpu_custom_call.1} parent=0 // loop_header_branch
    %14 = sbr.rel (%p12) target = $region8
  $region5: #{tpu_custom_call.1} parent=0 // loop_body
    %s16 = ssub.s32 %s11, 1
    %s17 = ssub.s32 %s11, 2
    %s18 = sadd.s32 %s11, 1
    %s19 = ssub.s32 %s11, %s18
    %p20 = scmp.eq.s32.totalorder %s19, 0
    %s22 = sadd.s32 %s21, 1
    %s23 = scalar_select %p20, %s21, %s22
    %p26 = pneg %p20
    %p27 = scmp.eq.s32.totalorder %s11, 2
    %p28 = por %p26, %p27
    %p29 = scmp.ne.s32.totalorder %s21, %s24
    %p30 = scmp.eq.s32.totalorder %s11, 0
    %p31 = por %p29, %p30
    %p32 = scmp.ne.s32.totalorder %s21, %s24
    %p33 = scmp.eq.s32.totalorder %s16, 2
    %p34 = por %p32, %p33
    %p35 = scmp.ne.s32.totalorder %s24, %s25
    %p36 = scmp.eq.s32.totalorder %s16, 0
    %p37 = por %p35, %p36
    %p38 = scmp.ne.s32.totalorder %s24, %s25
    %p39 = scmp.eq.s32.totalorder %s17, 2
    %p40 = por %p38, %p39
    %p42 = scmp.ne.s32.totalorder %s25, %s41
    %p43 = scmp.eq.s32.totalorder %s17, 0
    %p44 = por %p42, %p43
    %s46 = sadd.s32 %s45, 1
    %p49 = scmp.eq.s32.totalorder %s11, 2
    %p50 = scmp.ne.s32.totalorder %s45, %s47
    %p51 = scmp.eq.s32.totalorder %s11, 0
    %p52 = por %p50, %p51
    %p53 = scmp.ne.s32.totalorder %s45, %s47
    %p54 = scmp.eq.s32.totalorder %s16, 2
    %p55 = por %p53, %p54
    %p56 = scmp.ne.s32.totalorder %s47, %s48
    %p57 = scmp.eq.s32.totalorder %s16, 0
    %p58 = por %p56, %p57
    %p59 = scmp.ne.s32.totalorder %s47, %s48
    %p60 = scmp.eq.s32.totalorder %s17, 2
    %p61 = por %p59, %p60
    %p63 = scmp.ne.s32.totalorder %s48, %s62
    %p64 = scmp.eq.s32.totalorder %s17, 0
    %p65 = por %p63, %p64
    %s67 = sadd.s32 %s66, 1
    %p70 = scmp.eq.s32.totalorder %s11, 2
    %p71 = scmp.ne.s32.totalorder %s66, %s68
    %p72 = scmp.eq.s32.totalorder %s11, 0
    %p73 = por %p71, %p72
    %p74 = scmp.ne.s32.totalorder %s66, %s68
    %p75 = scmp.eq.s32.totalorder %s16, 2
    %p76 = por %p74, %p75
    %p77 = scmp.ne.s32.totalorder %s68, %s69
    %p78 = scmp.eq.s32.totalorder %s16, 0
    %p79 = por %p77, %p78
    %p80 = scmp.ne.s32.totalorder %s68, %s69
    %p81 = scmp.eq.s32.totalorder %s17, 2
    %p82 = por %p80, %p81
    %p84 = scmp.ne.s32.totalorder %s69, %s83
    %p85 = scmp.eq.s32.totalorder %s17, 0
    %p86 = por %p84, %p85
    %s88 = sadd.s32 %s87, 1
    %p91 = scmp.eq.s32.totalorder %s11, 2
    %p92 = scmp.ne.s32.totalorder %s87, %s89
    %p93 = scmp.eq.s32.totalorder %s11, 0
    %p94 = por %p92, %p93
    %p95 = scmp.ne.s32.totalorder %s87, %s89
    %p96 = scmp.eq.s32.totalorder %s16, 2
    %p97 = por %p95, %p96
    %p98 = scmp.ne.s32.totalorder %s89, %s90
    %p99 = scmp.eq.s32.totalorder %s16, 0
    %p100 = por %p98, %p99
    %p101 = scmp.ne.s32.totalorder %s89, %s90
    %p102 = scmp.eq.s32.totalorder %s17, 2
    %p103 = por %p101, %p102
    %p105 = scmp.ne.s32.totalorder %s90, %s104
    %p106 = scmp.eq.s32.totalorder %s17, 0
    %p107 = por %p105, %p106
    %s109 = sadd.s32 %s108, 1
    %p112 = scmp.eq.s32.totalorder %s11, 2
    %p113 = scmp.ne.s32.totalorder %s108, %s110
    %p114 = scmp.eq.s32.totalorder %s11, 0
    %p115 = por %p113, %p114
    %p116 = scmp.ne.s32.totalorder %s108, %s110
    %p117 = scmp.eq.s32.totalorder %s16, 2
    %p118 = por %p116, %p117
    %p119 = scmp.ne.s32.totalorder %s110, %s111
    %p120 = scmp.eq.s32.totalorder %s16, 0
    %p121 = por %p119, %p120
    %p122 = scmp.ne.s32.totalorder %s110, %s111
    %p123 = scmp.eq.s32.totalorder %s17, 2
    %p124 = por %p122, %p123
    %p126 = scmp.ne.s32.totalorder %s111, %s125
    %p127 = scmp.eq.s32.totalorder %s17, 0
    %p128 = por %p126, %p127
    %s130 = sadd.s32 %s129, 1
    %p133 = scmp.eq.s32.totalorder %s11, 2
    %p134 = scmp.ne.s32.totalorder %s129, %s131
    %p135 = scmp.eq.s32.totalorder %s11, 0
    %p136 = por %p134, %p135
    %p137 = scmp.ne.s32.totalorder %s129, %s131
    %p138 = scmp.eq.s32.totalorder %s16, 2
    %p139 = por %p137, %p138
    %p140 = scmp.ne.s32.totalorder %s131, %s132
    %p141 = scmp.eq.s32.totalorder %s16, 0
    %p142 = por %p140, %p141
    %p143 = scmp.ne.s32.totalorder %s131, %s132
    %p144 = scmp.eq.s32.totalorder %s17, 2
    %p145 = por %p143, %p144
    %p147 = scmp.ne.s32.totalorder %s132, %s146
    %p148 = scmp.eq.s32.totalorder %s17, 0
    %p149 = por %p147, %p148
    %p150 = scmp.le.s32.totalorder 1, %s11
    %p151 = scmp.lt.s32.totalorder %s11, 4
    %p152 = pnand %p150, %p151
    %p153 = pneg %p152
    // Predicated region
    $region9: #{tpu_custom_call.1} parent=5 // pred_check
      _
    $region10: #{tpu_custom_call.1} parent=5 // pred_check_branch
      %155 = sbr.rel (%p152) target = $region12
    $region11: #{tpu_custom_call.1} parent=5 // pred_region
      %s156 = ssub.s32 %s11, 1
      // Predicated region
      $region13: #{tpu_custom_call.1} parent=11 // pred_check
        %p157 = pneg %p58
      $region14: #{tpu_custom_call.1} parent=11 // pred_check_branch
        %159 = sbr.rel (%p157) target = $region16
      $region15: #{tpu_custom_call.1} parent=11 // pred_region
        _
      $region16: #{tpu_custom_call.1} parent=11 // pred_fallthru
        _
      // Predicated region
      $region17: #{tpu_custom_call.1} parent=11 // pred_check
        %p160 = pneg %p79
      $region18: #{tpu_custom_call.1} parent=11 // pred_check_branch
        %162 = sbr.rel (%p160) target = $region20
      $region19: #{tpu_custom_call.1} parent=11 // pred_region
        _
      $region20: #{tpu_custom_call.1} parent=11 // pred_fallthru
        _
      // Predicated region
      $region21: #{tpu_custom_call.1} parent=11 // pred_check
        %p163 = pneg %p100
      $region22: #{tpu_custom_call.1} parent=11 // pred_check_branch
        %165 = sbr.rel (%p163) target = $region24
      $region23: #{tpu_custom_call.1} parent=11 // pred_region
        _
      $region24: #{tpu_custom_call.1} parent=11 // pred_fallthru
        _
      // Predicated region
      $region25: #{tpu_custom_call.1} parent=11 // pred_check
        %p166 = pneg %p121
      $region26: #{tpu_custom_call.1} parent=11 // pred_check_branch
        %168 = sbr.rel (%p166) target = $region28
      $region27: #{tpu_custom_call.1} parent=11 // pred_region
        _
      $region28: #{tpu_custom_call.1} parent=11 // pred_fallthru
        _
    $region12: #{tpu_custom_call.1} parent=5 // pred_fallthru
      _
    %p169 = scmp.lt.s32.totalorder %s11, 3
    // Predicated region
    $region29: #{tpu_custom_call.1} parent=5 // pred_check
      %p170 = pneg %p169
    $region30: #{tpu_custom_call.1} parent=5 // pred_check_branch
      %172 = sbr.rel (%p170) target = $region32
    $region31: #{tpu_custom_call.1} parent=5 // pred_region
      // Predicated region
      $region33: #{tpu_custom_call.1} parent=31 // pred_check
        %p173 = pneg %p31
      $region34: #{tpu_custom_call.1} parent=31 // pred_check_branch
        %175 = sbr.rel (%p173) target = $region36
      $region35: #{tpu_custom_call.1} parent=31 // pred_region
        %s176 = smul.u32 2, %s11
        %p177 = scmp.lt.s32.totalorder %s176, 5
        %s178 = scalar_select %p177, %s176, 5
        %s179 = smul.addr %s178, 4
        %s180 = scalar_lea.vmem %s0, %s179
        %s181 = smul.u32 2, %s11
      $region36: #{tpu_custom_call.1} parent=31 // pred_fallthru
        _
    $region32: #{tpu_custom_call.1} parent=5 // pred_fallthru
      _
    %p182 = scmp.le.s32.totalorder 1, %s11
    %p183 = scmp.lt.s32.totalorder %s11, 4
    %p184 = pnand %p182, %p183
    %p185 = pneg %p184
    // Predicated region
    $region37: #{tpu_custom_call.1} parent=5 // pred_check
      _
    $region38: #{tpu_custom_call.1} parent=5 // pred_check_branch
      %187 = sbr.rel (%p184) target = $region40
    $region39: #{tpu_custom_call.1} parent=5 // pred_region
      %s188 = ssub.s32 %s11, 1
      %s189 = smul.u32 2, %s16
      %p190 = scmp.lt.s32.totalorder %s189, 5
      %s191 = scalar_select %p190, %s189, 5
      %s192 = smul.addr %s191, 4
      %s193 = scalar_lea.vmem %s0, %s192
      %p194 = pneg %p37
      %p195 = pneg %p34
      %p196 = pneg %p58
      %p197 = pneg %p55
      %p198 = pneg %p79
      %p199 = pneg %p76
      %p200 = pneg %p100
      %p201 = pneg %p97
      %p202 = pneg %p121
      %p203 = pneg %p118
      %p204 = pneg %p142
      %p205 = pneg %p139
      %s206 = smul.u32 2, %s16
      %p207 = scmp.lt.s32.totalorder %s206, 5
      %s208 = scalar_select %p207, %s206, 5
      %s209 = smul.addr %s208, 4
      %s210 = scalar_lea.vmem %s0, %s209
      %s211 = smul.u32 2, %s16
      %p213 = scmp.eq.s32.totalorder %s16, 0
      // Predicated region
      $region41: #{tpu_custom_call.1} parent=39 // pred_check
        %p214 = pneg %p213
      $region42: #{tpu_custom_call.1} parent=39 // pred_check_branch
        %216 = sbr.rel (%p214) target = $region44
      $region43: #{tpu_custom_call.1} parent=39 // pred_region
        %vm217 = vcmask 0
        %218 = vst.msk [vmem:[#allocation2] sm:$0x1] %vm217, 0.0
      $region44: #{tpu_custom_call.1} parent=39 // pred_fallthru
        _
      %v219 = vld [vmem:[%s210] sm:$0xf]
      %v220 = vld [vmem:[%s210 + $0x4] sm:$0xf]
      %v221 = vld [vmem:[%s4] sm:$0x7]
      %v222 = vld [vmem:[%s1] sm:$0xf]
      %v223 = vld [vmem:[%s1 + $0x4] sm:$0xf]
      %v224 = vld [vmem:[%s1 + $0x8] sm:$0xf]
      %v225 = vld [vmem:[%s1 + $0xc] sm:$0xf]
      %v226 = vld [vmem:[%s1 + $0x10] sm:$0x7]
      %v227 = vperm.slane %v221, 0
      %v230 = vunpack.c.l.b16 %v219
      %v231 = vunpack.c.l.b16 %v220
      %v232 = vpack.c.b16 %v231, %v230
      %v238 = vunpack.c.l.b16 %v222
      %v239 = vunpack.c.l.b16 %v223
      %v240 = vunpack.c.l.b16 %v224
      %v241 = vunpack.c.l.b16 %v225
      %v242 = vunpack.c.l.b16 %v226
      %v243 = vpack.c.b16 %v239, %v238
      %v244 = vpack.c.b16 %v241, %v240
      %v245 = vpack.c.b16 %v242, %v242
      %vm248 = vcmask 302080
      %v250 = vsel %vm248, %v232, 0
      %vm252 = vcmask 1041408
      %vm253 = vcmask 1042432
      %v254 = vsel %vm252, 4294967295, 65535
      %v255 = vsel %vm253, %v254, 0
      %v257 = vand.u32 %v245, %v255
      %259 = vmatpush.bf16.msra.mxu0 0
      %260 = vmatpush.bf16.msra.mxu0 0
      %261 = vmatpush.bf16.msra.mxu0 0
      %262 = vmatpush.bf16.msra.mxu0 0
      %263 = vmatpush.bf16.msra.mxu0 0
      %264 = vmatpush.bf16.msra.mxu0 %v257
      %265 = vmatpush.bf16.msra.mxu0 %v244
      %266 = vmatpush.bf16.msra.mxu0 %v243
      %267 = vmatmul.bf16.gmra.mxu0 %v250
      %v268 = vpop.f32.mrf.mxu0
      %v269 = vadd.f32 %v227, %v268
      %v270 = vpop.f32.mrf.mxu0
      %v271 = vadd.f32 %v227, %v270
      %272 = vdwg.mxu0
      %v273 = vmax.f32 %v269, 0.0
      %v274 = vmax.f32 %v271, 0.0
      %v275 = vpack.c.bf16 %v274, %v273
      %v276 = vld [vmem:[%s2] sm:$0xf]
      %v277 = vld [vmem:[%s2 + $0x4] sm:$0xf]
      %v278 = vld [vmem:[%s2 + $0x8] sm:$0xf]
      %v279 = vld [vmem:[%s2 + $0xc] sm:$0xf]
      %v280 = vld [vmem:[%s2 + $0x10] sm:$0xf]
      %v281 = vld [vmem:[%s2 + $0x14] sm:$0xf]
      %v282 = vld [vmem:[%s2 + $0x18] sm:$0xf]
      %v283 = vld [vmem:[%s2 + $0x1c] sm:$0xf]
      %v284 = vld [vmem:[%s2 + $0x20] sm:$0xf]
      %v285 = vld [vmem:[%s2 + $0x24] sm:$0xf]
      %v286 = vld [vmem:[%s2 + $0x28] sm:$0xf]
      %v287 = vld [vmem:[%s2 + $0x2c] sm:$0xf]
      %v288 = vld [vmem:[%s2 + $0x30] sm:$0xf]
      %v289 = vld [vmem:[%s2 + $0x34] sm:$0xf]
      %v290 = vld [vmem:[%s2 + $0x38] sm:$0xf]
      %v291 = vld [vmem:[%s2 + $0x3c] sm:$0xf]
      %v292 = vperm.slane %v221, 1
      %v309 = vunpack.c.l.b16 %v276
      %v310 = vunpack.c.l.b16 %v277
      %v311 = vunpack.c.l.b16 %v278
      %v312 = vunpack.c.l.b16 %v279
      %v313 = vunpack.c.l.b16 %v280
      %v314 = vunpack.c.l.b16 %v281
      %v315 = vunpack.c.l.b16 %v282
      %v316 = vunpack.c.l.b16 %v283
      %v317 = vunpack.c.l.b16 %v284
      %v318 = vunpack.c.l.b16 %v285
      %v319 = vunpack.c.l.b16 %v286
      %v320 = vunpack.c.l.b16 %v287
      %v321 = vunpack.c.l.b16 %v288
      %v322 = vunpack.c.l.b16 %v289
      %v323 = vunpack.c.l.b16 %v290
      %v324 = vunpack.c.l.b16 %v291
      %v325 = vpack.c.b16 %v310, %v309
      %v326 = vpack.c.b16 %v312, %v311
      %v327 = vpack.c.b16 %v314, %v313
      %v328 = vpack.c.b16 %v316, %v315
      %v329 = vpack.c.b16 %v318, %v317
      %v330 = vpack.c.b16 %v320, %v319
      %v331 = vpack.c.b16 %v322, %v321
      %v332 = vpack.c.b16 %v324, %v323
      %341 = vmatpush.bf16.msra.mxu0 %v332
      %342 = vmatpush.bf16.msra.mxu0 %v331
      %343 = vmatpush.bf16.msra.mxu0 %v330
      %344 = vmatpush.bf16.msra.mxu0 %v329
      %345 = vmatpush.bf16.msra.mxu0 %v328
      %346 = vmatpush.bf16.msra.mxu0 %v327
      %347 = vmatpush.bf16.msra.mxu0 %v326
      %348 = vmatpush.bf16.msra.mxu0 %v325
      %349 = vmatmul.bf16.gmra.mxu0 %v275
      %v350 = vpop.f32.mrf.mxu0
      %v351 = vadd.f32 %v292, %v350
      %v352 = vpop.f32.mrf.mxu0
      %v353 = vadd.f32 %v292, %v352
      %354 = vdwg.mxu0
      %v355 = vmax.f32 %v351, 0.0
      %v356 = vmax.f32 %v353, 0.0
      %v357 = vpack.c.bf16 %v356, %v355
      %v358 = vld [vmem:[%s3] sm:$0xf]
      %v359 = vld [vmem:[%s3 + $0x4] sm:$0xf]
      %v360 = vld [vmem:[%s3 + $0x8] sm:$0xf]
      %v361 = vld [vmem:[%s3 + $0xc] sm:$0xf]
      %v362 = vld [vmem:[%s3 + $0x10] sm:$0xf]
      %v363 = vld [vmem:[%s3 + $0x14] sm:$0xf]
      %v364 = vld [vmem:[%s3 + $0x18] sm:$0xf]
      %v365 = vld [vmem:[%s3 + $0x1c] sm:$0xf]
      %v366 = vld [vmem:[%s3 + $0x20] sm:$0xf]
      %v367 = vld [vmem:[%s3 + $0x24] sm:$0xf]
      %v368 = vld [vmem:[%s3 + $0x28] sm:$0xf]
      %v369 = vld [vmem:[%s3 + $0x2c] sm:$0xf]
      %v370 = vld [vmem:[%s3 + $0x30] sm:$0xf]
      %v371 = vld [vmem:[%s3 + $0x34] sm:$0xf]
      %v372 = vld [vmem:[%s3 + $0x38] sm:$0xf]
      %v373 = vld [vmem:[%s3 + $0x3c] sm:$0xf]
      %v374 = vperm.slane %v221, 2
      %v391 = vunpack.c.l.b16 %v358
      %v392 = vunpack.c.l.b16 %v359
      %v393 = vunpack.c.l.b16 %v360
      %v394 = vunpack.c.l.b16 %v361
      %v395 = vunpack.c.l.b16 %v362
      %v396 = vunpack.c.l.b16 %v363
      %v397 = vunpack.c.l.b16 %v364
      %v398 = vunpack.c.l.b16 %v365
      %v399 = vunpack.c.l.b16 %v366
      %v400 = vunpack.c.l.b16 %v367
      %v401 = vunpack.c.l.b16 %v368
      %v402 = vunpack.c.l.b16 %v369
      %v403 = vunpack.c.l.b16 %v370
      %v404 = vunpack.c.l.b16 %v371
      %v405 = vunpack.c.l.b16 %v372
      %v406 = vunpack.c.l.b16 %v373
      %v407 = vpack.c.b16 %v392, %v391
      %v408 = vpack.c.b16 %v394, %v393
      %v409 = vpack.c.b16 %v396, %v395
      %v410 = vpack.c.b16 %v398, %v397
      %v411 = vpack.c.b16 %v400, %v399
      %v412 = vpack.c.b16 %v402, %v401
      %v413 = vpack.c.b16 %v404, %v403
      %v414 = vpack.c.b16 %v406, %v405
      %423 = vmatpush.bf16.msra.mxu0 %v414
      %424 = vmatpush.bf16.msra.mxu0 %v413
      %425 = vmatpush.bf16.msra.mxu0 %v412
      %426 = vmatpush.bf16.msra.mxu0 %v411
      %427 = vmatpush.bf16.msra.mxu0 %v410
      %428 = vmatpush.bf16.msra.mxu0 %v409
      %429 = vmatpush.bf16.msra.mxu0 %v408
      %430 = vmatpush.bf16.msra.mxu0 %v407
      %431 = vmatmul.bf16.gmra.mxu0 %v357
      %v432 = vpop.f32.mrf.mxu0
      %v433 = vadd.f32 %v374, %v432
      %v434 = vpop.f32.mrf.mxu0
      %v435 = vadd.f32 %v374, %v434
      %436 = vdwg.mxu0
      %s437 = smul.u32 %s16, 16
      %v438 = vlaneseq
      %v439 = vshrl.u32 %v438, 7
      %v440 = vadd.s32 %v439, 8
      %v441 = vstv %s437
      %v442 = vadd.s32 %v441, %v439
      %v443 = vadd.s32 %v441, %v440
      %vm444 = vcmp.lt.s32.totalorder %v442, 40
      %vm445 = vcmp.lt.s32.totalorder %v443, 40
      %v446 = vsel %vm444, 1, 0
      %v447 = vsel %vm445, 1, 0
      %v448 = vcvt.s32.f32 %v446
      %v449 = vcvt.s32.f32 %v447
      %v450 = vld [vmem:[#allocation2] sm:$0x1]
      %v451 = vmul.f32 %v433, %v448
      %v452 = vmul.f32 %v435, %v449
      %vm453 = vcmask 31744
      %v454 = vsel %vm453, %v451, 0.0
      %v455 = vsel %vm453, %v452, 0.0
      %v456 = vadd.f32 %v454, %v455
      %457 = vadd.xlane.f32.xlu0 %v456
      %v458 = vpop.xlane.xlu0 %457
      %v459 = vrot.slane %v458, 4
      %v460 = vadd.f32 %v458, %v459
      %v461 = vrot.slane %v460, 2
      %v462 = vadd.f32 %v460, %v461
      %v463 = vrot.slane %v462, 1
      %v464 = vadd.f32 %v462, %v463
      %s465 = vtos %v464
      %v466 = vstv %s465
      %v467 = vadd.f32 %v450, %v466
      %vm468 = vcmask 0
      %469 = vst.msk [vmem:[#allocation2] sm:$0x1] %vm468, %v467
      %471 = vset.pattern.permute.xlu0 4
      %472 = vperm.xlu0 %471, %v433
      %v473 = vpop.permute.xlu0 %472
      %476 = vset.pattern.permute.xlu0 4
      %477 = vperm.xlu0 %476, %v435
      %v478 = vpop.permute.xlu0 %477
      %v480 = vadd.f32 %v473, %v433
      %v481 = vadd.f32 %v478, %v435
      %s482 = scalar_lea.vmem %s5, %s437
      %483 = vst.msk [vmem:[%s482] sm:$0xff] %vm453, %v480
      %484 = vst.msk [vmem:[%s482 + $0x8] sm:$0xff] %vm453, %v481
      %p485 = scmp.eq.s32.totalorder %s16, 2
      // Predicated region
      $region45: #{tpu_custom_call.1} parent=39 // pred_check
        %p486 = pneg %p485
      $region46: #{tpu_custom_call.1} parent=39 // pred_check_branch
        %488 = sbr.rel (%p486) target = $region48
      $region47: #{tpu_custom_call.1} parent=39 // pred_region
        %v489 = vld [vmem:[#allocation2] sm:$0x1]
        %v490 = vmul.f32 %v489, 0.00625
        %v491 = vld [vmem:[%s5] sm:$0xff]
        %v492 = vld [vmem:[%s5 + $0x8] sm:$0xff]
        %v493 = vld [vmem:[%s5 + $0x10] sm:$0xff]
        %v494 = vld [vmem:[%s5 + $0x18] sm:$0xff]
        %v495 = vld [vmem:[%s5 + $0x20] sm:$0xff]
        %v496 = vld [vmem:[%s5 + $0x28] sm:$0xff]
        %v498 = vperm.slane %v490, 0
        %499 = vset.pattern.permute.xlu0 0
        %500 = vperm.xlu0 %499, %v498
        %v501 = vpop.permute.xlu0 %500
        %v503 = vsub.f32 %v491, %v501
        %v504 = vsub.f32 %v492, %v501
        %v505 = vsub.f32 %v493, %v501
        %v506 = vsub.f32 %v494, %v501
        %v507 = vsub.f32 %v495, %v501
        %v508 = vsub.f32 %v496, %v501
        %509 = vst.msk [vmem:[%s5] sm:$0xff] %vm453, %v503
        %510 = vst.msk [vmem:[%s5 + $0x8] sm:$0xff] %vm453, %v504
        %511 = vst.msk [vmem:[%s5 + $0x10] sm:$0xff] %vm453, %v505
        %512 = vst.msk [vmem:[%s5 + $0x18] sm:$0xff] %vm453, %v506
        %513 = vst.msk [vmem:[%s5 + $0x20] sm:$0xff] %vm453, %v507
        %514 = vst.msk [vmem:[%s5 + $0x28] sm:$0xff] %vm453, %v508
      $region48: #{tpu_custom_call.1} parent=39 // pred_fallthru
        _
      // Predicated region
      $region49: #{tpu_custom_call.1} parent=39 // pred_check
        %p515 = pneg %p139
      $region50: #{tpu_custom_call.1} parent=39 // pred_check_branch
        %517 = sbr.rel (%p515) target = $region52
      $region51: #{tpu_custom_call.1} parent=39 // pred_region
        _
      $region52: #{tpu_custom_call.1} parent=39 // pred_fallthru
        _
      // Predicated region
      $region53: #{tpu_custom_call.1} parent=39 // pred_check
        %p518 = pneg %p139
      $region54: #{tpu_custom_call.1} parent=39 // pred_check_branch
        %520 = sbr.rel (%p518) target = $region56
      $region55: #{tpu_custom_call.1} parent=39 // pred_region
        _
      $region56: #{tpu_custom_call.1} parent=39 // pred_fallthru
        _
    $region40: #{tpu_custom_call.1} parent=5 // pred_fallthru
      _
    %p521 = scmp.le.s32.totalorder 2, %s11
    // Predicated region
    $region57: #{tpu_custom_call.1} parent=5 // pred_check
      %p522 = pneg %p521
    $region58: #{tpu_custom_call.1} parent=5 // pred_check_branch
      %524 = sbr.rel (%p522) target = $region60
    $region59: #{tpu_custom_call.1} parent=5 // pred_region
      %s525 = ssub.s32 %s11, 2
    $region60: #{tpu_custom_call.1} parent=5 // pred_fallthru
      _
  $region6: #{tpu_custom_call.1} parent=0 // loop_footer
    %s15 = sadd.s32 1, %s11
  $region7: #{tpu_custom_call.1} parent=0 // loop_footer_branch
    %10 = sbr.rel target = $region3
  $region8: #{tpu_custom_call.1} parent=0 // loop_exit
    _

</llo_original>
